<compile_context>
chip_gen: v7x
topology: tpu7x:2x2x1
jax: 0.10.0
libtpu: 0.0.40
codegen_flags: <defaults>
</compile_context>

<pallas_src>
import functools
import math

import jax
import jax.numpy as jnp
import numpy as np
from jax.experimental import pallas as pl
from jax.experimental.pallas import tpu as pltpu

_HALF_LOG_2PI = 0.5 * math.log(2.0 * math.pi)

_TB_CAP = 2048      # batch-tile cap (review: amortize ~0.35us/step overhead)
_LANE = 128
_SUBLANE = 8


def _softplus(v):
    # numerically stable softplus, used identically in kernel and reference
    return jnp.maximum(v, 0.0) + jnp.log1p(jnp.exp(-jnp.abs(v)))


# --------------------------------- kernel -----------------------------------

def _vi_kernel(x_ref, logits_ref, lat_ref, out_ref, acc_ref, *,
               zdim, d_total, d_tile, mask_tail_d):
    """Grid = (batch tile i [parallel], D tile j [arbitrary]).

    acc_ref : (TB, 1) f32 running row-sum of Bernoulli log-probs over D.
    out_ref : (TB, 2) f32, col 0 = log_px, col 1 = kl (written on last D step).
    """
    j = pl.program_id(1)

    @pl.when(j == 0)
    def _init():
        acc_ref[...] = jnp.zeros_like(acc_ref)

    # Bernoulli(logits=l).log_prob(x) = x*l - softplus(l), with binary x.
    x = x_ref[...].astype(jnp.float32)               # (TB, TD)
    logits = logits_ref[...].astype(jnp.float32)     # (TB, TD)
    # TODO(synk): bf16 softplus on the EUP (v6e/v7x) ~doubles transcendental
    # throughput but must be re-validated against the 1e-4 check; keep f32.
    log_px_el = x * logits - _softplus(logits)
    if mask_tail_d:  # static: only emitted when TD does not divide D
        col = jax.lax.broadcasted_iota(jnp.int32, log_px_el.shape, 1)
        log_px_el = jnp.where(col < d_total - j * d_tile, log_px_el, 0.0)
    acc_ref[...] += jnp.sum(log_px_el, axis=1, keepdims=True)

    @pl.when(j == pl.num_programs(1) - 1)
    def _finalize():
        # kl = log_qz - log_pz = sum_Z( 0.5*(z^2 - t^2) - log(sigma) ),
        # t = (z - mu)/sigma; the two 0.5*log(2*pi) constants cancel.
        lat = lat_ref[...]                           # (TB, 3Z) = [z | mu | sigma]
        z = lat[:, 0 * zdim:1 * zdim]
        mu = lat[:, 1 * zdim:2 * zdim]
        sigma = lat[:, 2 * zdim:3 * zdim]
        t = (z - mu) / sigma
        kl = jnp.sum(0.5 * (z * z - t * t) - jnp.log(sigma),
                     axis=1, keepdims=True)          # (TB, 1)
        out_ref[:, 0:1] = acc_ref[...]
        out_ref[:, 1:2] = kl


# ------------------------------ tile selection -------------------------------

def _round_up(x, m):
    return ((x + m - 1) // m) * m


def _round_down(x, m):
    return (x // m) * m


def _vmem_limit_bytes():
    """Generation-aware explicit scoped-VMEM limit (perf-review item #1/#2)."""
    phys = 64 * 1024 * 1024                     # conservative default = v7x
    try:
        phys = int(getattr(pltpu.get_tpu_info(), "vmem_capacity_bytes", phys))
    except Exception:
        pass
    # v5e/v6e (128 MiB physical) -> 96 MiB ; v7x (64 MiB physical) -> 48 MiB.
    return min((phys * 3) // 4, 96 * 1024 * 1024)


def _pick_tiles(batch, d, x_itemsize, logits_itemsize, vmem_limit):
    """(TB, TD) sized against double-buffered HBM windows + f32 upcast temps."""
    # per (row, col) element: double-buffered x + logits windows, plus ~4 f32
    # temporaries (x.astype, logits.astype, softplus intermediates) which
    # dominate the real VMEM footprint.
    elem_bytes = 2 * x_itemsize + 2 * logits_itemsize + 4 * 4
    budget = (vmem_limit * 2) // 3              # headroom: latents/out/acc/misc
    max_elems = max(_SUBLANE * _LANE, budget // elem_bytes)

    # Batch tile: >=2 tiles when B is large enough so the "parallel" batch axis
    # shards across both TensorCores on v7x; multiple of 32 (int8 sublane tile).
    if batch <= 64:
        tb = batch                               # full-dim block, no padding
    else:
        tb = min(_TB_CAP, _round_up(pl.cdiv(batch, 2), 32))

    if tb * d <= max_elems:
        return tb, d                             # whole D row stays resident

    # D too wide: tile it along the trailing "arbitrary" grid axis.
    td = max(_LANE, _round_down(max_elems // tb, _LANE))
    if tb * td > max_elems and tb > 32:
        tb = max(32, min(tb, _round_down(max_elems // td, 32)))
    # prefer a TD that divides D (avoids per-element tail masking in-kernel)
    for cand in range(td, _LANE - 1, -_LANE):
        if d % cand == 0:
            td = cand
            break
    return tb, td


# --------------------------------- wrapper -----------------------------------

def variational_inference_pallas(x_flat, logits, z, mu, sigma, beta=1.0):
    """VariationalInference.forward hot path.

    x_flat : (B, D) binary observations (any dtype; int8 recommended).
    logits : (B, D) Bernoulli logits from the decoder (bf16 recommended).
    z, mu, sigma : (B, Z) float32 posterior sample / parameters.
    Returns (loss scalar, diagnostics dict of per-datapoint [B] tensors).
    """
    B, D = x_flat.shape
    Z = z.shape[1]

    vmem_limit = _vmem_limit_bytes()
    TB, TD = _pick_tiles(B, D, x_flat.dtype.itemsize, logits.dtype.itemsize,
                         vmem_limit)
    n_b = pl.cdiv(B, TB)
    n_d = pl.cdiv(D, TD)
    mask_tail_d = (D % TD) != 0

    # Latent pack: one (B, 3Z) stream instead of three sub-128-lane streams.
    lat = jnp.concatenate([z, mu, sigma], axis=1)

    kernel = functools.partial(_vi_kernel, zdim=Z, d_total=D, d_tile=TD,
                               mask_tail_d=mask_tail_d)

    # NOTE: no jnp.pad of the big (B, D) streams. A ragged last batch tile is
    # handled by Pallas boundary clamping: stale pad rows stay row-local and
    # their (clamped) writes never reach the (B, 2) output.
    out = pl.pallas_call(
        kernel,
        out_shape=jax.ShapeDtypeStruct((B, 2), jnp.float32),
        grid=(n_b, n_d),
        in_specs=[
            pl.BlockSpec((TB, TD), lambda i, j: (i, j)),       # x
            pl.BlockSpec((TB, TD), lambda i, j: (i, j)),       # logits
            pl.BlockSpec((TB, 3 * Z), lambda i, j: (i, 0)),    # [z | mu | sigma]
        ],
        out_specs=pl.BlockSpec((TB, 2), lambda i, j: (i, 0)),
        scratch_shapes=[pltpu.VMEM((TB, 1), jnp.float32)],
        compiler_params=pltpu.CompilerParams(
            dimension_semantics=("parallel", "arbitrary"),
            vmem_limit_bytes=vmem_limit),
    )(x_flat, logits, lat)

    log_px = out[:, 0]
    kl = out[:, 1]
    elbo = log_px - kl
    loss = -jnp.mean(log_px - beta * kl)      # tiny [B] vector math in XLA
    return loss, {"elbo": elbo, "log_px": log_px, "kl": kl}


# ----------------------- synthetic VAE "model" (glue) ------------------------

def init_model_params(key, D, Z):
    k1, k2 = jax.random.split(key)
    return {
        "w_enc": jax.random.normal(k1, (D, 2 * Z), jnp.float32) * 0.02,
        "b_enc": jnp.zeros((2 * Z,), jnp.float32),
        "w_dec": jax.random.normal(k2, (Z, D), jnp.float32) * 0.02,
        "b_dec": jnp.zeros((D,), jnp.float32),
    }


def model_forward(params, x_flat, eps):
    """Synthetic Bernoulli-VAE: px logits (bf16), latent z, qz params."""
    h = x_flat @ params["w_enc"] + params["b_enc"]
    mu, pre_sigma = jnp.split(h, 2, axis=1)
    sigma = _softplus(pre_sigma) + 1e-6
    z = mu + sigma * eps                      # reparameterized sample (qz.rsample)
    logits = (z @ params["w_dec"] + params["b_dec"]).astype(jnp.bfloat16)
    return logits, z, mu, sigma


# ------------------------------ reference (JAX) -------------------------------

def vi_reference(x_flat, logits, z, mu, sigma, beta):
    x = x_flat.astype(jnp.float32)
    logits = logits.astype(jnp.float32)
    log_px = jnp.sum(x * logits - _softplus(logits), axis=1)
    log_pz = jnp.sum(-0.5 * z * z - _HALF_LOG_2PI, axis=1)
    t = (z - mu) / sigma
    log_qz = jnp.sum(-0.5 * t * t - jnp.log(sigma) - _HALF_LOG_2PI, axis=1)
    kl = log_qz - log_pz
    elbo = log_px - kl
    loss = -jnp.mean(log_px - beta * kl)
    return loss, {"elbo": elbo, "log_px": log_px, "kl": kl}


if __name__ == "__main__":
    B, C, H, W = 2, 4, 16, 16
    Z = 32
    D = C * H * W
    beta = 10.0  # matches the script-level `beta = 10`

    key = jax.random.PRNGKey(0)
    k_x, k_eps, k_params = jax.random.split(key, 3)

    # binary observations (Bernoulli likelihood), NCHW then flattened;
    # stored as int8 so the kernel's x stream is 1 byte/element in HBM.
    x = (jax.random.uniform(k_x, (B, C, H, W)) < 0.5).astype(jnp.int8)
    x_flat_i8 = x.reshape(B, D)
    x_flat_f32 = x_flat_i8.astype(jnp.float32)
    eps = jax.random.normal(k_eps, (B, Z), jnp.float32)

    params = init_model_params(k_params, D, Z)
    logits, z, mu, sigma = model_forward(params, x_flat_f32, eps)

    loss, diag = variational_inference_pallas(
        x_flat_i8, logits, z, mu, sigma, beta=beta)
    loss = jax.block_until_ready(loss)
    diag = jax.tree_util.tree_map(jax.block_until_ready, diag)

    # correctness check against pure-JAX reference on the same shipped data
    # (note: logits are bf16-quantized in HBM; the reference sees the same
    # tensor, matching the kernel's input contract)
    ref_loss, ref_diag = vi_reference(x_flat_i8, logits, z, mu, sigma, beta)
    np.testing.assert_allclose(np.asarray(loss), np.asarray(ref_loss),
                               rtol=1e-4, atol=1e-4)
    for k in ("elbo", "log_px", "kl"):
        np.testing.assert_allclose(np.asarray(diag[k]), np.asarray(ref_diag[k]),
                                   rtol=1e-4, atol=1e-4)

    print("KERNEL_OK")
</pallas_src>

<mosaic_0001>
module attributes {stable_mosaic.version = 11 : i64} {
  func.func @_vi_kernel(%arg0: i32, %arg1: i32, %arg2: memref<2x1024xi8, #tpu.memory_space<vmem>>, %arg3: memref<2x1024xbf16, #tpu.memory_space<vmem>>, %arg4: memref<2x96xf32, #tpu.memory_space<vmem>>, %arg5: memref<2x2xf32, #tpu.memory_space<vmem>>, %arg6: memref<2x1xf32, #tpu.memory_space<vmem>>) attributes {dimension_semantics = [#tpu.dimension_semantics<parallel>, #tpu.dimension_semantics<arbitrary>], iteration_bounds = array<i64: 1, 1>, scalar_prefetch = 0 : i64, scratch_operands = 1 : i64, tpu.core_type = #tpu.core_type<tc>, window_params = [{transform_indices = @transform_0, window_bounds = array<i64: 2, 1024>}, {transform_indices = @transform_1, window_bounds = array<i64: 2, 1024>}, {transform_indices = @transform_2, window_bounds = array<i64: 2, 96>}, {transform_indices = @transform_3, window_bounds = array<i64: 2, 2>}]} {
    %c0_i32 = arith.constant 0 : i32
    %0 = arith.cmpi eq, %arg1, %c0_i32 : i32
    %1 = arith.extui %0 : i1 to i32
    %c0_i32_0 = arith.constant 0 : i32
    %2 = arith.cmpi ne, %1, %c0_i32_0 : i32
    scf.if %2 {
      %cst_12 = arith.constant 0.000000e+00 : f32
      %25 = vector.broadcast %cst_12 : f32 to vector<2x1xf32>
      %c0_13 = arith.constant 0 : index
      %c0_14 = arith.constant 0 : index
      %26 = vector.load %arg6[%c0_13, %c0_14] : memref<2x1xf32, #tpu.memory_space<vmem>>, vector<2x1xf32>
      tpu.vector_store %arg6[%c0_13, %c0_14], %25 {strides = array<i32>} : memref<2x1xf32, #tpu.memory_space<vmem>>, vector<2x1xf32>,
    } else {
    }
    %c0 = arith.constant 0 : index
    %c0_1 = arith.constant 0 : index
    %3 = vector.load %arg2[%c0, %c0_1] : memref<2x1024xi8, #tpu.memory_space<vmem>>, vector<2x1024xi8>
    %4 = arith.sitofp %3 : vector<2x1024xi8> to vector<2x1024xf32>
    %c0_2 = arith.constant 0 : index
    %c0_3 = arith.constant 0 : index
    %5 = vector.load %arg3[%c0_2, %c0_3] : memref<2x1024xbf16, #tpu.memory_space<vmem>>, vector<2x1024xbf16>
    %6 = arith.extf %5 : vector<2x1024xbf16> to vector<2x1024xf32>
    %7 = arith.mulf %4, %6 : vector<2x1024xf32>
    %cst = arith.constant 0.000000e+00 : f32
    %8 = vector.broadcast %cst : f32 to vector<2x1024xf32>
    %9 = arith.maximumf %6, %8 : vector<2x1024xf32>
    %10 = math.absf %6 : vector<2x1024xf32>
    %cst_4 = arith.constant 0.000000e+00 : f32
    %11 = vector.broadcast %cst_4 : f32 to vector<2x1024xf32>
    %12 = arith.subf %11, %10 : vector<2x1024xf32>
    %13 = math.exp %12 : vector<2x1024xf32>
    %14 = math.log1p %13 : vector<2x1024xf32>
    %15 = arith.addf %9, %14 : vector<2x1024xf32>
    %16 = arith.subf %7, %15 : vector<2x1024xf32>
    %c0_5 = arith.constant 0 : index
    %c0_6 = arith.constant 0 : index
    %17 = vector.load %arg6[%c0_5, %c0_6] : memref<2x1xf32, #tpu.memory_space<vmem>>, vector<2x1xf32>
    %cst_7 = arith.constant dense<0.000000e+00> : vector<2xf32>
    %18 = vector.multi_reduction <add>, %16, %cst_7 [1] : vector<2x1024xf32> to vector<2xf32>
    %19 = vector.shape_cast %18 : vector<2xf32> to vector<2x1xf32>
    %20 = arith.addf %17, %19 : vector<2x1xf32>
    %c0_8 = arith.constant 0 : index
    %c0_9 = arith.constant 0 : index
    %21 = vector.load %arg6[%c0_8, %c0_9] : memref<2x1xf32, #tpu.memory_space<vmem>>, vector<2x1xf32>
    tpu.vector_store %arg6[%c0_8, %c0_9], %20 {strides = array<i32>} : memref<2x1xf32, #tpu.memory_space<vmem>>, vector<2x1xf32>,
    %c0_i32_10 = arith.constant 0 : i32
    %22 = arith.cmpi eq, %arg1, %c0_i32_10 : i32
    %23 = arith.extui %22 : i1 to i32
    %c0_i32_11 = arith.constant 0 : i32
    %24 = arith.cmpi ne, %23, %c0_i32_11 : i32
    scf.if %24 {
      %c0_12 = arith.constant 0 : index
      %c0_13 = arith.constant 0 : index
      %25 = vector.load %arg4[%c0_12, %c0_13] : memref<2x96xf32, #tpu.memory_space<vmem>>, vector<2x96xf32>
      %26 = vector.extract_strided_slice %25 {offsets = [0, 0], sizes = [2, 32], strides = [1, 1]} : vector<2x96xf32> to vector<2x32xf32>
      %27 = vector.extract_strided_slice %25 {offsets = [0, 32], sizes = [2, 32], strides = [1, 1]} : vector<2x96xf32> to vector<2x32xf32>
      %28 = vector.extract_strided_slice %25 {offsets = [0, 64], sizes = [2, 32], strides = [1, 1]} : vector<2x96xf32> to vector<2x32xf32>
      %29 = arith.subf %26, %27 : vector<2x32xf32>
      %30 = arith.divf %29, %28 : vector<2x32xf32>
      %31 = arith.mulf %26, %26 : vector<2x32xf32>
      %32 = arith.mulf %30, %30 : vector<2x32xf32>
      %33 = arith.subf %31, %32 : vector<2x32xf32>
      %cst_14 = arith.constant 5.000000e-01 : f32
      %34 = vector.broadcast %cst_14 : f32 to vector<2x32xf32>
      %35 = arith.mulf %34, %33 : vector<2x32xf32>
      %36 = math.log %28 : vector<2x32xf32>
      %37 = arith.subf %35, %36 : vector<2x32xf32>
      %cst_15 = arith.constant dense<0.000000e+00> : vector<2xf32>
      %38 = vector.multi_reduction <add>, %37, %cst_15 [1] : vector<2x32xf32> to vector<2xf32>
      %39 = vector.shape_cast %38 : vector<2xf32> to vector<2x1xf32>
      %c0_16 = arith.constant 0 : index
      %c0_17 = arith.constant 0 : index
      %40 = vector.load %arg6[%c0_16, %c0_17] : memref<2x1xf32, #tpu.memory_space<vmem>>, vector<2x1xf32>
      %c0_18 = arith.constant 0 : index
      %c0_19 = arith.constant 0 : index
      %41 = vector.load %arg5[%c0_18, %c0_19] : memref<2x2xf32, #tpu.memory_space<vmem>>, vector<2x1xf32>
      tpu.vector_store %arg5[%c0_18, %c0_19], %40 {strides = array<i32>} : memref<2x2xf32, #tpu.memory_space<vmem>>, vector<2x1xf32>,
      %c0_20 = arith.constant 0 : index
      %c1 = arith.constant 1 : index
      %42 = vector.load %arg5[%c0_20, %c1] : memref<2x2xf32, #tpu.memory_space<vmem>>, vector<2x1xf32>
      tpu.vector_store %arg5[%c0_20, %c1], %39 {strides = array<i32>} : memref<2x2xf32, #tpu.memory_space<vmem>>, vector<2x1xf32>,
    } else {
    }
    return
  }
  func.func @transform_0(%arg0: i32, %arg1: i32) -> (i32, i32) {
    %c0_i32 = arith.constant 0 : i32
    return %arg0, %arg1 : i32, i32
  }
  func.func @transform_1(%arg0: i32, %arg1: i32) -> (i32, i32) {
    %c0_i32 = arith.constant 0 : i32
    return %arg0, %arg1 : i32, i32
  }
  func.func @transform_2(%arg0: i32, %arg1: i32) -> (i32, i32) {
    %c0_i32 = arith.constant 0 : i32
    %c0_i32_0 = arith.constant 0 : i32
    return %arg0, %c0_i32 : i32, i32
  }
  func.func @transform_3(%arg0: i32, %arg1: i32) -> (i32, i32) {
    %c0_i32 = arith.constant 0 : i32
    %c0_i32_0 = arith.constant 0 : i32
    return %arg0, %c0_i32 : i32, i32
  }
}

</mosaic_0001>

<llo_original>
// kernel: tpu_custom_call.1
$region0: #{tpu_custom_call.1}
  #allocation0 [shape = 'u32[]', space=smem, size = 0x4, offset = 0x4, fixed_abs, tag = 'smem constant byte address 0x4 - core index']
  #allocation1 [shape = 'u32[144,128]{1,0:T(1,128)}', space=vmem, size = 0x12000, scoped, tag = 'internal scratch']
  #allocation2 [shape = 'f32[2,1]{1,0:T(2,128)}', space=vmem, size = 0x400, scoped, tag = 'scratch operand']
  %s0 = inlined_call_operand.hbm [shape: s8[2,1024], index: 0, kind: input, shape index: {}]
  %s1 = inlined_call_operand.hbm [shape: bf16[2,1024], index: 1, kind: input, shape index: {}]
  %s2 = inlined_call_operand.vmem [shape: f32[2,96], index: 2, kind: input, shape index: {}]
  %s3 = inlined_call_operand.hbm [shape: f32[2,2], index: 3, kind: output, shape index: {}]
  %s4 = sld [smem:[#allocation0]]
  $region38: #{tpu_custom_call.1} parent=0
    _
  %s6 = ssub.s32 1, %s4
  %s7 = scalar_select 0, %s6, %s4
  $region1: #{tpu_custom_call.1} parent=0
    #allocation3 [shape = 'u8[4096]{0}', space=vmem, size = 0x1000, scoped, tag = 'input window, operand 0, single buffered']
    #allocation4 [shape = 's32[1]{0}', space=sflag, size = 0x4, scoped, tag = 'scoped memory for tpu_custom_call.1']
    #allocation5 [shape = 's32[1]{0}', space=sflag, size = 0x4, scoped, tag = 'scoped memory for tpu_custom_call.1']
    #allocation6 [shape = 'u8[4096]{0}', space=vmem, size = 0x1000, scoped, tag = 'input window, operand 1, single buffered']
    #allocation7 [shape = 's32[1]{0}', space=sflag, size = 0x4, scoped, tag = 'scoped memory for tpu_custom_call.1']
    #allocation8 [shape = 'u8[1024]{0}', space=vmem, size = 0x400, scoped, tag = 'output window, operand 0, single buffered']
    %8 = vsyncpa [#allocation4], 0
    %9 = vsyncpa [#allocation7], 0
    %10 = vsyncpa [#allocation5], 0
    // Predicated region
    $region2: #{tpu_custom_call.1} parent=1 // pred_check
      _
    $region3: #{tpu_custom_call.1} parent=1 // pred_check_branch
      %12 = sbr.rel (0) target = $region5
    $region4: #{tpu_custom_call.1} parent=1 // pred_region
      %s14 = ssub.s32 128, 128
      %15 = vsyncadd [#allocation4], %s14
      %s17 = sshll.u32 [#allocation3], 4
      %s18 = int_to_ptr.vmem [resolvable:$true] %s17
      %20 = dma.hbm_to_vmem [thread:$0]  %s0, 128, %s18, [#allocation4]
    $region5: #{tpu_custom_call.1} parent=1 // pred_fallthru
      _
    // Predicated region
    $region6: #{tpu_custom_call.1} parent=1 // pred_check
      _
    $region7: #{tpu_custom_call.1} parent=1 // pred_check_branch
      %22 = sbr.rel (0) target = $region9
    $region8: #{tpu_custom_call.1} parent=1 // pred_region
      %s24 = ssub.s32 128, 128
      %25 = vsyncadd [#allocation7], %s24
      %s27 = sshll.u32 [#allocation6], 4
      %s28 = int_to_ptr.vmem [resolvable:$true] %s27
      %30 = dma.hbm_to_vmem [thread:$0]  %s1, 128, %s28, [#allocation7]
    $region9: #{tpu_custom_call.1} parent=1 // pred_fallthru
      _
    // Predicated region
    $region10: #{tpu_custom_call.1} parent=1 // pred_check
      _
    $region11: #{tpu_custom_call.1} parent=1 // pred_check_branch
      %32 = sbr.rel (0) target = $region13
    $region12: #{tpu_custom_call.1} parent=1 // pred_region
      _
    $region13: #{tpu_custom_call.1} parent=1 // pred_fallthru
      _
    // Predicated region
    $region14: #{tpu_custom_call.1} parent=1 // pred_check
      _
    $region15: #{tpu_custom_call.1} parent=1 // pred_check_branch
      %34 = sbr.rel (0) target = $region17
    $region16: #{tpu_custom_call.1} parent=1 // pred_region
      %35 = dma.done [#allocation4], 128
    $region17: #{tpu_custom_call.1} parent=1 // pred_fallthru
      _
    // Predicated region
    $region18: #{tpu_custom_call.1} parent=1 // pred_check
      _
    $region19: #{tpu_custom_call.1} parent=1 // pred_check_branch
      %37 = sbr.rel (0) target = $region21
    $region20: #{tpu_custom_call.1} parent=1 // pred_region
      %38 = dma.done [#allocation7], 128
    $region21: #{tpu_custom_call.1} parent=1 // pred_fallthru
      _
    %p39 = scmp.eq.s32.totalorder 0, 0
    // Predicated region
    $region22: #{tpu_custom_call.1} parent=1 // pred_check
      %p40 = pneg %p39
    $region23: #{tpu_custom_call.1} parent=1 // pred_check_branch
      %42 = sbr.rel (%p40) target = $region25
    $region24: #{tpu_custom_call.1} parent=1 // pred_region
      %vm43 = vcmask 1024
      %44 = vst.msk [vmem:[#allocation2] sm:$0x3] %vm43, 0.0
    $region25: #{tpu_custom_call.1} parent=1 // pred_fallthru
      _
    %v45 = vld [vmem:[#allocation3] sm:$0xff]
    %v46 = vunpack.c.0.s8 %v45
    %v47 = vunpack.c.1.s8 %v45
    %v48 = vunpack.c.2.s8 %v45
    %v49 = vunpack.c.3.s8 %v45
    %v50 = vcvt.s32.f32 %v46
    %v51 = vcvt.s32.f32 %v47
    %v52 = vcvt.s32.f32 %v48
    %v53 = vcvt.s32.f32 %v49
    %v54 = vld [vmem:[#allocation6] sm:$0xff]
    %v55 = vunpack.c.l.bf16 %v54
    %v56 = vunpack.c.h.bf16 %v54
    %v59 = vcombine.high %v55, %v55
    %v61 = vunpack.c.l.s4 1983009808
    %v62 = vunpack.c.0.s8 %v61
    %v63 = vlaneseq
    %v64 = vshrl.u32 %v63, 7
    %v65 = vsub.s32 %v62, %v64
    %v66 = vrot.slane %v55, %v65
    %v68 = vunpack.c.l.s4 1983009808
    %v69 = vunpack.c.0.s8 %v68
    %v70 = vlaneseq
    %v71 = vshrl.u32 %v70, 7
    %v72 = vsub.s32 %v69, %v71
    %v73 = vrot.slane %v59, %v72
    %v74 = vcombine.high %v56, %v56
    %v76 = vunpack.c.l.s4 1983009808
    %v77 = vunpack.c.0.s8 %v76
    %v78 = vlaneseq
    %v79 = vshrl.u32 %v78, 7
    %v80 = vsub.s32 %v77, %v79
    %v81 = vrot.slane %v56, %v80
    %v83 = vunpack.c.l.s4 1983009808
    %v84 = vunpack.c.0.s8 %v83
    %v85 = vlaneseq
    %v86 = vshrl.u32 %v85, 7
    %v87 = vsub.s32 %v84, %v86
    %v88 = vrot.slane %v74, %v87
    %v93 = vmul.f32 %v50, %v66
    %v94 = vmul.f32 %v51, %v73
    %v95 = vmul.f32 %v52, %v81
    %v96 = vmul.f32 %v53, %v88
    %v97 = vmax.f32 %v55, 0.0
    %v98 = vmax.f32 %v56, 0.0
    %v99 = vand.u32 2147483647, %v55
    %v100 = vand.u32 2147483647, %v56
    %v101 = vsub.f32 0.0, %v99
    %v102 = vsub.f32 0.0, %v100
    %v103 = vmul.f32 %v101, 1.442695
    %v104 = vpow.pop %v103
    %v105 = vmul.f32 %v102, 1.442695
    %v106 = vpow.pop %v105
    %v107 = vadd.f32 %v104, 1.0
    %v108 = vlog2.pop %v107
    %v109 = vmul.f32 %v108, 0.6931472
    %v110 = vmul.f32 -0.5, %v104
    %v111 = vadd.f32 %v110, 1.0
    %v112 = vmul.f32 %v111, %v104
    %v113 = vand.u32 2147483647, %v104
    %vm114 = vcmp.lt.f32.partialorder %v113, 0.0004427343
    %v115 = vsel %vm114, %v112, %v109
    %v116 = vadd.f32 %v106, 1.0
    %v117 = vlog2.pop %v116
    %v118 = vmul.f32 %v117, 0.6931472
    %v119 = vmul.f32 -0.5, %v106
    %v120 = vadd.f32 %v119, 1.0
    %v121 = vmul.f32 %v120, %v106
    %v122 = vand.u32 2147483647, %v106
    %vm123 = vcmp.lt.f32.partialorder %v122, 0.0004427343
    %v124 = vsel %vm123, %v121, %v118
    %v125 = vadd.f32 %v97, %v115
    %v126 = vadd.f32 %v98, %v124
    %v129 = vcombine.high %v125, %v125
    %v131 = vunpack.c.l.s4 1983009808
    %v132 = vunpack.c.0.s8 %v131
    %v133 = vlaneseq
    %v134 = vshrl.u32 %v133, 7
    %v135 = vsub.s32 %v132, %v134
    %v136 = vrot.slane %v125, %v135
    %v138 = vunpack.c.l.s4 1983009808
    %v139 = vunpack.c.0.s8 %v138
    %v140 = vlaneseq
    %v141 = vshrl.u32 %v140, 7
    %v142 = vsub.s32 %v139, %v141
    %v143 = vrot.slane %v129, %v142
    %v144 = vcombine.high %v126, %v126
    %v146 = vunpack.c.l.s4 1983009808
    %v147 = vunpack.c.0.s8 %v146
    %v148 = vlaneseq
    %v149 = vshrl.u32 %v148, 7
    %v150 = vsub.s32 %v147, %v149
    %v151 = vrot.slane %v126, %v150
    %v153 = vunpack.c.l.s4 1983009808
    %v154 = vunpack.c.0.s8 %v153
    %v155 = vlaneseq
    %v156 = vshrl.u32 %v155, 7
    %v157 = vsub.s32 %v154, %v156
    %v158 = vrot.slane %v144, %v157
    %v163 = vsub.f32 %v93, %v136
    %v164 = vsub.f32 %v94, %v143
    %v165 = vsub.f32 %v95, %v151
    %v166 = vsub.f32 %v96, %v158
    %v167 = vld [vmem:[#allocation2] sm:$0x3]
    %v172 = vcombine.high %v163, %v163
    %v173 = vcombine.high %v164, %v164
    %v174 = vcombine.high %v165, %v165
    %v175 = vcombine.high %v166, %v166
    %vm180 = vcmask 1041408
    %v181 = vsel %vm180, %v163, 0.0
    %v182 = vsel %vm180, %v172, 0.0
    %v183 = vadd.f32 %v181, %v182
    %v184 = vsel %vm180, %v164, 0.0
    %v185 = vadd.f32 %v183, %v184
    %v186 = vsel %vm180, %v173, 0.0
    %v187 = vadd.f32 %v185, %v186
    %v188 = vsel %vm180, %v165, 0.0
    %v189 = vadd.f32 %v187, %v188
    %v190 = vsel %vm180, %v174, 0.0
    %v191 = vadd.f32 %v189, %v190
    %v192 = vsel %vm180, %v166, 0.0
    %v193 = vadd.f32 %v191, %v192
    %v194 = vsel %vm180, %v175, 0.0
    %v195 = vadd.f32 %v193, %v194
    %196 = vadd.xlane.f32.xlu0 %v195
    %v197 = vpop.xlane.xlu0 %196
    %v198 = vadd.f32 %v167, %v197
    %vm199 = vcmask 1024
    %200 = vst.msk [vmem:[#allocation2] sm:$0x3] %vm199, %v198
    // Predicated region
    $region26: #{tpu_custom_call.1} parent=1 // pred_check
      %p201 = pneg %p39
    $region27: #{tpu_custom_call.1} parent=1 // pred_check_branch
      %203 = sbr.rel (%p201) target = $region29
    $region28: #{tpu_custom_call.1} parent=1 // pred_region
      %v204 = vld [vmem:[%s2] sm:$0x3]
      %206 = vrot.lane.b32.xlu0 %v204, 96
      %v207 = vpop.permute.xlu0 %206
      %v209 = vsub.f32 %v204, %v207
      %210 = vrot.lane.b32.xlu0 %v204, 64
      %v211 = vpop.permute.xlu0 %210
      %v213 = vrcp.pop %v211
      %v214 = vmul.f32 %v209, %v213
      %v215 = vmul.f32 %v204, %v204
      %v216 = vmul.f32 %v214, %v214
      %v217 = vsub.f32 %v215, %v216
      %v218 = vmul.f32 %v217, 0.5
      %v219 = vlog2.pop %v204
      %v220 = vmul.f32 %v219, 0.6931472
      %222 = vrot.lane.b32.xlu0 %v220, 64
      %v223 = vpop.permute.xlu0 %222
      %v225 = vsub.f32 %v218, %v223
      %vm226 = vcmask 254976
      %v227 = vsel %vm226, %v225, 0.0
      %228 = vadd.xlane.f32.xlu0 %v227
      %v229 = vpop.xlane.xlu0 %228
      %v230 = vld [vmem:[#allocation2] sm:$0x3]
      %231 = vst.msk [vmem:[#allocation8] sm:$0x3] %vm199, %v230
      %vm232 = vcmask 9224
      %233 = vst.msk [vmem:[#allocation8] sm:$0x3] %vm232, %v229
    $region29: #{tpu_custom_call.1} parent=1 // pred_fallthru
      _
    // Predicated region
    $region30: #{tpu_custom_call.1} parent=1 // pred_check
      _
    $region31: #{tpu_custom_call.1} parent=1 // pred_check_branch
      %235 = sbr.rel (0) target = $region33
    $region32: #{tpu_custom_call.1} parent=1 // pred_region
      %s237 = ssub.s32 32, 32
      %238 = vsyncadd [#allocation5], %s237
      %s240 = sshll.u32 [#allocation8], 4
      %s241 = int_to_ptr.vmem [resolvable:$true] %s240
      %243 = dma.vmem_to_hbm [thread:$0]  %s241, 32, %s3, [#allocation5]
    $region33: #{tpu_custom_call.1} parent=1 // pred_fallthru
      _
    // Predicated region
    $region34: #{tpu_custom_call.1} parent=1 // pred_check
      _
    $region35: #{tpu_custom_call.1} parent=1 // pred_check_branch
      %245 = sbr.rel (0) target = $region37
    $region36: #{tpu_custom_call.1} parent=1 // pred_region
      %246 = dma.done [#allocation5], 32
    $region37: #{tpu_custom_call.1} parent=1 // pred_fallthru
      _
    %247 = vsyncpa [#allocation4], 1
    %248 = vsyncpa [#allocation7], 1
    %249 = vsyncpa [#allocation5], 1

</llo_original>
